<compile_context>
chip_gen: v7x
topology: tpu7x:2x2x1
jax: 0.10.0
libtpu: 0.0.40
codegen_flags: <defaults>
</compile_context>

<pallas_src>
import functools

import jax
import jax.numpy as jnp
from jax.experimental import pallas as pl
from jax.experimental.pallas import tpu as pltpu


def _round_up(x, m):
    return ((x + m - 1) // m) * m


def _predictor_kernel(x_ref, w_ref, b_ref, cls_ref, bbox_ref, *, k, k4,
                      kcls_pad):
    # x_ref:    (TN, C)     VMEM bf16  row tile of flattened RoI features
    # w_ref:    (C, Kpad)   VMEM bf16  fused [cls | pad | bbox | pad] weights
    # b_ref:    (1, Kpad)   VMEM f32   fused bias (same column layout)
    # cls_ref:  (TN, k)     VMEM f32   class scores tile
    # bbox_ref: (TN, k4)    VMEM f32   bbox deltas tile
    fused = jnp.dot(x_ref[...], w_ref[...],
                    preferred_element_type=jnp.float32)
    fused = fused + b_ref[...]                       # bias add in f32
    cls_ref[...] = fused[:, :k].astype(cls_ref.dtype)
    bbox_ref[...] = fused[:, kcls_pad:kcls_pad + k4].astype(bbox_ref.dtype)


def pack_predictor_weights(w_cls, b_cls, w_bbox, b_bbox):
    """Pre-pack (once, at model load) the two heads into one bf16 matmul.

    w_cls:  (num_classes, C)      b_cls:  (num_classes,)
    w_bbox: (num_classes*4, C)    b_bbox: (num_classes*4,)

    Layout: columns [0:k] = cls, columns [kcls_pad:kcls_pad+k4] = bbox, where
    kcls_pad = round_up(k, 128).  Total Kpad = kcls_pad + round_up(k4, 128)
    (a 256 multiple for small class counts).  Extra columns are zero.
    Weights are stored in bf16; bias stays f32 (added after the f32-acc dot).
    """
    k, c = w_cls.shape
    k4 = w_bbox.shape[0]
    kcls_pad = _round_up(k, 128)
    kbbox_pad = _round_up(k4, 128)
    kpad = kcls_pad + kbbox_pad

    w_packed = jnp.zeros((c, kpad), dtype=jnp.bfloat16)
    w_packed = w_packed.at[:, :k].set(w_cls.T.astype(jnp.bfloat16))
    w_packed = w_packed.at[:, kcls_pad:kcls_pad + k4].set(
        w_bbox.T.astype(jnp.bfloat16))

    b_packed = jnp.zeros((1, kpad), dtype=jnp.float32)
    b_packed = b_packed.at[0, :k].set(b_cls.astype(jnp.float32))
    b_packed = b_packed.at[0, kcls_pad:kcls_pad + k4].set(
        b_bbox.astype(jnp.float32))
    return w_packed, b_packed, k, k4, kcls_pad


def _pick_row_tile(n, c):
    """Row tile: multiple of 8, <=512, VMEM-bounded, >=2 grid steps when N
    is big enough so both v7x TensorCores get work."""
    if n <= 16:
        return n  # full-extent block (always legal), single grid step
    # Cap so the double-buffered bf16 x tile stays around <=4 MiB total:
    # fits v5e's 16 MiB default scoped VMEM next to the resident weights.
    vmem_cap = max(8, ((2 * 1024 * 1024) // (2 * c)) // 8 * 8)
    cap = min(512, vmem_cap)
    tn = min(cap, _round_up(pl.cdiv(n, 2), 8))
    return max(tn, 8)


@functools.partial(jax.jit, static_argnames=("k", "k4", "kcls_pad"))
def fast_rcnn_predictor_packed(x, w_packed, b_packed, *, k, k4, kcls_pad):
    """Forward pass with pre-packed weights.

    x:        (N, C) or (N, C, 1, 1) float32
    w_packed: (C, Kpad) bf16 fused weights (see pack_predictor_weights)
    b_packed: (1, Kpad) f32 fused bias
    returns:  (scores (N, k) f32, bbox_deltas (N, k4) f32)
    """
    if x.ndim == 4:
        assert x.shape[2:] == (1, 1), (
            f"x has the wrong shape, expecting the last two dimensions to be "
            f"[1,1] instead of {list(x.shape[2:])}")
    x2 = x.reshape(x.shape[0], -1)  # flatten(start_dim=1)

    n, c = x2.shape
    kpad = w_packed.shape[1]
    x_bf = x2.astype(jnp.bfloat16)  # bf16 MXU operand; accumulate stays f32

    tn = _pick_row_tile(n, c)
    grid = (pl.cdiv(n, tn),)

    # Cost estimate in sync with actual dtypes (bf16 x/W, f32 bias/outputs).
    cost = pl.CostEstimate(
        flops=2 * n * c * kpad,
        transcendentals=0,
        bytes_accessed=(n * c * 2 + c * kpad * 2 + kpad * 4
                        + n * (k + k4) * 4),
    )

    kernel = functools.partial(_predictor_kernel, k=k, k4=k4,
                               kcls_pad=kcls_pad)

    scores, bbox_deltas = pl.pallas_call(
        kernel,
        out_shape=(jax.ShapeDtypeStruct((n, k), jnp.float32),
                   jax.ShapeDtypeStruct((n, k4), jnp.float32)),
        grid=grid,
        in_specs=[
            pl.BlockSpec((tn, c), lambda i: (i, 0)),     # x row tile (bf16)
            pl.BlockSpec((c, kpad), lambda i: (0, 0)),   # weights, resident
            pl.BlockSpec((1, kpad), lambda i: (0, 0)),   # bias, resident
        ],
        out_specs=(
            pl.BlockSpec((tn, k), lambda i: (i, 0)),     # scores tile
            pl.BlockSpec((tn, k4), lambda i: (i, 0)),    # bbox deltas tile
        ),
        compiler_params=pltpu.CompilerParams(
            dimension_semantics=("parallel",)),
        cost_estimate=cost,
    )(x_bf, w_packed, b_packed)
    return scores, bbox_deltas


def fast_rcnn_predictor(x, w_cls, b_cls, w_bbox, b_bbox):
    """Convenience wrapper with PyTorch nn.Linear-layout weights.

    For inference, call pack_predictor_weights() once and use
    fast_rcnn_predictor_packed() directly to avoid repacking every call.
    """
    w_packed, b_packed, k, k4, kcls_pad = pack_predictor_weights(
        w_cls, b_cls, w_bbox, b_bbox)
    return fast_rcnn_predictor_packed(x, w_packed, b_packed,
                                      k=k, k4=k4, kcls_pad=kcls_pad)


def init_params(key, in_channels, num_classes):
    """Deterministic synthetic init matching nn.Linear parameter shapes."""
    k1, k2, k3, k4 = jax.random.split(key, 4)
    bound_c = 1.0 / jnp.sqrt(in_channels)
    w_cls = jax.random.uniform(k1, (num_classes, in_channels),
                               jnp.float32, -bound_c, bound_c)
    b_cls = jax.random.uniform(k2, (num_classes,),
                               jnp.float32, -bound_c, bound_c)
    w_bbox = jax.random.uniform(k3, (num_classes * 4, in_channels),
                                jnp.float32, -bound_c, bound_c)
    b_bbox = jax.random.uniform(k4, (num_classes * 4,),
                                jnp.float32, -bound_c, bound_c)
    return w_cls, b_cls, w_bbox, b_bbox


if __name__ == "__main__":
    key = jax.random.PRNGKey(0)
    k_x, k_p = jax.random.split(key)

    batch = 2
    in_channels = 32
    num_classes = 5  # including background

    # Input as produced by the RoI box head: (N, C, 1, 1)
    x = jax.random.normal(k_x, (batch, in_channels, 1, 1), jnp.float32)
    w_cls, b_cls, w_bbox, b_bbox = init_params(k_p, in_channels, num_classes)

    # Pre-pack once (hoisted out of the per-call path, includes bf16 cast).
    w_packed, b_packed, k, k4, kcls_pad = pack_predictor_weights(
        w_cls, b_cls, w_bbox, b_bbox)

    scores, bbox_deltas = fast_rcnn_predictor_packed(
        x, w_packed, b_packed, k=k, k4=k4, kcls_pad=kcls_pad)
    jax.block_until_ready((scores, bbox_deltas))

    # Reference check in plain JAX f32 (same math as the PyTorch forward).
    # Kernel uses bf16 matmul operands with f32 accumulation, so the tolerance
    # vs the f32 reference is relaxed to ~1e-2 relative (was 1e-5 in full f32).
    x_flat = x.reshape(batch, -1)
    ref_scores = x_flat @ w_cls.T + b_cls
    ref_bbox = x_flat @ w_bbox.T + b_bbox
    assert scores.shape == (batch, num_classes)
    assert bbox_deltas.shape == (batch, num_classes * 4)
    assert jnp.allclose(scores, ref_scores, atol=5e-2, rtol=5e-2)
    assert jnp.allclose(bbox_deltas, ref_bbox, atol=5e-2, rtol=5e-2)

    print("KERNEL_OK")
</pallas_src>

<mosaic_0001>
module attributes {stable_mosaic.version = 11 : i64} {
  func.func @_predictor_kernel(%arg0: i32, %arg1: memref<2x32xbf16, #tpu.memory_space<vmem>>, %arg2: memref<32x256xbf16, #tpu.memory_space<vmem>>, %arg3: memref<1x256xf32, #tpu.memory_space<vmem>>, %arg4: memref<2x5xf32, #tpu.memory_space<vmem>>, %arg5: memref<2x20xf32, #tpu.memory_space<vmem>>) attributes {dimension_semantics = [#tpu.dimension_semantics<parallel>], iteration_bounds = array<i64: 1>, scalar_prefetch = 0 : i64, scratch_operands = 0 : i64, tpu.core_type = #tpu.core_type<tc>, window_params = [{transform_indices = @transform_0, window_bounds = array<i64: 2, 32>}, {pipeline_mode = #tpu.pipeline_mode<synchronous>, transform_indices = @transform_1, window_bounds = array<i64: 32, 256>}, {pipeline_mode = #tpu.pipeline_mode<synchronous>, transform_indices = @transform_2, window_bounds = array<i64: 1, 256>}, {transform_indices = @transform_3, window_bounds = array<i64: 2, 5>}, {transform_indices = @transform_4, window_bounds = array<i64: 2, 20>}]} {
    %c0 = arith.constant 0 : index
    %c0_0 = arith.constant 0 : index
    %0 = vector.load %arg1[%c0, %c0_0] : memref<2x32xbf16, #tpu.memory_space<vmem>>, vector<2x32xbf16>
    %c0_1 = arith.constant 0 : index
    %c0_2 = arith.constant 0 : index
    %1 = vector.load %arg2[%c0_1, %c0_2] : memref<32x256xbf16, #tpu.memory_space<vmem>>, vector<32x256xbf16>
    %cst = arith.constant dense<0.000000e+00> : vector<2x256xf32>
    %2 = tpu.matmul %0, %1, %cst {dimension_numbers = #tpu.dot_dimension_numbers<[1], [0], [0], [1], [0, 0, 1, 1], [], []>} : vector<2x32xbf16>, vector<32x256xbf16>, vector<2x256xf32> -> vector<2x256xf32>
    %c0_3 = arith.constant 0 : index
    %c0_4 = arith.constant 0 : index
    %3 = vector.load %arg3[%c0_3, %c0_4] : memref<1x256xf32, #tpu.memory_space<vmem>>, vector<1x256xf32>
    %4 = vector.broadcast %3 : vector<1x256xf32> to vector<2x256xf32>
    %5 = arith.addf %2, %4 : vector<2x256xf32>
    %6 = vector.extract_strided_slice %5 {offsets = [0, 0], sizes = [2, 5], strides = [1, 1]} : vector<2x256xf32> to vector<2x5xf32>
    %c0_5 = arith.constant 0 : index
    %c0_6 = arith.constant 0 : index
    %7 = vector.load %arg4[%c0_5, %c0_6] : memref<2x5xf32, #tpu.memory_space<vmem>>, vector<2x5xf32>
    tpu.vector_store %arg4[%c0_5, %c0_6], %6 {strides = array<i32>} : memref<2x5xf32, #tpu.memory_space<vmem>>, vector<2x5xf32>,
    %8 = vector.extract_strided_slice %5 {offsets = [0, 128], sizes = [2, 20], strides = [1, 1]} : vector<2x256xf32> to vector<2x20xf32>
    %c0_7 = arith.constant 0 : index
    %c0_8 = arith.constant 0 : index
    %9 = vector.load %arg5[%c0_7, %c0_8] : memref<2x20xf32, #tpu.memory_space<vmem>>, vector<2x20xf32>
    tpu.vector_store %arg5[%c0_7, %c0_8], %8 {strides = array<i32>} : memref<2x20xf32, #tpu.memory_space<vmem>>, vector<2x20xf32>,
    return
  }
  func.func @transform_0(%arg0: i32) -> (i32, i32) {
    %c0_i32 = arith.constant 0 : i32
    %c0_i32_0 = arith.constant 0 : i32
    return %arg0, %c0_i32 : i32, i32
  }
  func.func @transform_1(%arg0: i32) -> (i32, i32) {
    %c0_i32 = arith.constant 0 : i32
    %c0_i32_0 = arith.constant 0 : i32
    %c0_i32_1 = arith.constant 0 : i32
    return %c0_i32, %c0_i32_0 : i32, i32
  }
  func.func @transform_2(%arg0: i32) -> (i32, i32) {
    %c0_i32 = arith.constant 0 : i32
    %c0_i32_0 = arith.constant 0 : i32
    %c0_i32_1 = arith.constant 0 : i32
    return %c0_i32, %c0_i32_0 : i32, i32
  }
  func.func @transform_3(%arg0: i32) -> (i32, i32) {
    %c0_i32 = arith.constant 0 : i32
    %c0_i32_0 = arith.constant 0 : i32
    return %arg0, %c0_i32 : i32, i32
  }
  func.func @transform_4(%arg0: i32) -> (i32, i32) {
    %c0_i32 = arith.constant 0 : i32
    %c0_i32_0 = arith.constant 0 : i32
    return %arg0, %c0_i32 : i32, i32
  }
}

</mosaic_0001>

<llo_original>
// kernel: fast_rcnn_predictor_packed.1
$region0: #{fast_rcnn_predictor_packed.1}
  #allocation0 [shape = 'u32[]', space=smem, size = 0x4, offset = 0x4, fixed_abs, tag = 'smem constant byte address 0x4 - core index']
  #allocation1 [shape = 'u32[144,128]{1,0:T(1,128)}', space=vmem, size = 0x12000, scoped, tag = 'internal scratch']
  %s0 = inlined_call_operand.vmem [shape: bf16[2,32], index: 0, kind: input, shape index: {}]
  %s1 = inlined_call_operand.hbm [shape: bf16[32,256], index: 1, kind: input, shape index: {}]
  %s2 = inlined_call_operand.vmem [shape: f32[1,256], index: 2, kind: input, shape index: {}]
  %s3 = inlined_call_operand.hbm [shape: f32[2,5], index: 3, kind: output, shape index: {0}]
  %s4 = inlined_call_operand.hbm [shape: f32[2,20], index: 4, kind: output, shape index: {1}]
  %5 = xla_tuple %s3, %s4
  %s6 = sld [smem:[#allocation0]]
  $region34: #{fast_rcnn_predictor_packed.1} parent=0
    _
  %s8 = ssub.s32 1, %s6
  %s9 = scalar_select 0, %s8, %s6
  $region1: #{fast_rcnn_predictor_packed.1} parent=0
    #allocation2 [shape = 'u8[16384]{0}', space=vmem, size = 0x4000, scoped, tag = 'input window, operand 1, single buffered']
    #allocation3 [shape = 's32[1]{0}', space=sflag, size = 0x4, scoped, tag = 'scoped memory for fast_rcnn_predictor_packed.1']
    #allocation4 [shape = 's32[1]{0}', space=sflag, size = 0x4, scoped, tag = 'scoped memory for fast_rcnn_predictor_packed.1']
    #allocation5 [shape = 'u8[1024]{0}', space=vmem, size = 0x400, scoped, tag = 'output window, operand 0, single buffered']
    #allocation6 [shape = 'u8[1024]{0}', space=vmem, size = 0x400, scoped, tag = 'output window, operand 1, single buffered']
    #allocation7 [shape = 's32[1]{0}', space=sflag, size = 0x4, scoped, tag = 'scoped memory for fast_rcnn_predictor_packed.1']
    %10 = vsyncpa [#allocation3], 0
    %11 = vsyncpa [#allocation4], 0
    %12 = vsyncpa [#allocation7], 0
    // Predicated region
    $region2: #{fast_rcnn_predictor_packed.1} parent=1 // pred_check
      _
    $region3: #{fast_rcnn_predictor_packed.1} parent=1 // pred_check_branch
      %14 = sbr.rel (0) target = $region5
    $region4: #{fast_rcnn_predictor_packed.1} parent=1 // pred_region
      _
    $region5: #{fast_rcnn_predictor_packed.1} parent=1 // pred_fallthru
      _
    // Predicated region
    $region6: #{fast_rcnn_predictor_packed.1} parent=1 // pred_check
      _
    $region7: #{fast_rcnn_predictor_packed.1} parent=1 // pred_check_branch
      %16 = sbr.rel (0) target = $region9
    $region8: #{fast_rcnn_predictor_packed.1} parent=1 // pred_region
      %s18 = ssub.s32 512, 512
      %19 = vsyncadd [#allocation3], %s18
      %s20 = sshll.u32 [#allocation2], 4
      %s21 = int_to_ptr.vmem [resolvable:$true] %s20
      %26 = dma.hbm_to_vmem [thread:$0]  %s1, 512, %s21, [#allocation3], 128, 128, 8
    $region9: #{fast_rcnn_predictor_packed.1} parent=1 // pred_fallthru
      _
    // Predicated region
    $region10: #{fast_rcnn_predictor_packed.1} parent=1 // pred_check
      _
    $region11: #{fast_rcnn_predictor_packed.1} parent=1 // pred_check_branch
      %28 = sbr.rel (0) target = $region13
    $region12: #{fast_rcnn_predictor_packed.1} parent=1 // pred_region
      _
    $region13: #{fast_rcnn_predictor_packed.1} parent=1 // pred_fallthru
      _
    // Predicated region
    $region14: #{fast_rcnn_predictor_packed.1} parent=1 // pred_check
      _
    $region15: #{fast_rcnn_predictor_packed.1} parent=1 // pred_check_branch
      %30 = sbr.rel (0) target = $region17
    $region16: #{fast_rcnn_predictor_packed.1} parent=1 // pred_region
      %31 = dma.done [#allocation3], 512
    $region17: #{fast_rcnn_predictor_packed.1} parent=1 // pred_fallthru
      _
    %v33 = vld [vmem:[%s0] sm:$0x1]
    %v34 = vld [vmem:[#allocation2] sm:$0xff]
    %v35 = vld [vmem:[#allocation2 + $0x8] sm:$0xff]
    %v36 = vld [vmem:[#allocation2 + $0x10] sm:$0xff]
    %v37 = vld [vmem:[#allocation2 + $0x18] sm:$0xff]
    %v38 = vld [vmem:[%s2] sm:$0x3]
    %v40 = vlaneseq
    %v41 = vshrl.u32 %v40, 7
    %v42 = vsub.s32 0, %v41
    %v43 = vrot.slane %v38, %v42
    %v44 = vlaneseq
    %v45 = vshrl.u32 %v44, 7
    %v46 = vsub.s32 1, %v45
    %v47 = vrot.slane %v38, %v46
    %v54 = vunpack.c.l.b16 %v34
    %v55 = vunpack.c.h.b16 %v34
    %v56 = vunpack.c.l.b16 %v35
    %v57 = vunpack.c.h.b16 %v35
    %v58 = vunpack.c.l.b16 %v36
    %v59 = vunpack.c.h.b16 %v36
    %v60 = vunpack.c.l.b16 %v37
    %v61 = vunpack.c.h.b16 %v37
    %v62 = vpack.c.b16 %v56, %v54
    %v63 = vpack.c.b16 %v57, %v55
    %v64 = vpack.c.b16 %v60, %v58
    %v65 = vpack.c.b16 %v61, %v59
    %vm70 = vcmask 261120
    %v72 = vsel %vm70, %v33, 0
    %74 = vmatprep.subr.bf16.mxu0 %v63
    %75 = vmatpush1.bf16.msra.mxu0 %v62
    %76 = vmatprep.subr.bf16.mxu0 %v65
    %77 = vmatpush1.bf16.msra.mxu0 %v64
    %78 = vmatprep.subr.bf16.mxu0 0
    %79 = vmatpush1.bf16.msra.mxu0 0
    %80 = vmatprep.subr.bf16.mxu0 0
    %81 = vmatpush1.bf16.msra.mxu0 0
    %82 = vmatprep.subr.bf16.mxu0 0
    %83 = vmatpush1.bf16.msra.mxu0 0
    %84 = vmatprep.subr.bf16.mxu0 0
    %85 = vmatpush1.bf16.msra.mxu0 0
    %86 = vmatprep.subr.bf16.mxu0 0
    %87 = vmatpush1.bf16.msra.mxu0 0
    %88 = vmatprep.subr.bf16.mxu0 0
    %89 = vmatpush1.bf16.msra.mxu0 0
    %90 = vmatprep.subr.bf16.mxu0 0
    %91 = vmatpush1.bf16.msra.mxu0 0
    %92 = vmatprep.subr.bf16.mxu0 0
    %93 = vmatpush1.bf16.msra.mxu0 0
    %94 = vmatprep.subr.bf16.mxu0 0
    %95 = vmatpush1.bf16.msra.mxu0 0
    %96 = vmatprep.subr.bf16.mxu0 0
    %97 = vmatpush1.bf16.msra.mxu0 0
    %98 = vmatprep.subr.bf16.mxu0 0
    %99 = vmatpush1.bf16.msra.mxu0 0
    %100 = vmatprep.subr.bf16.mxu0 0
    %101 = vmatpush1.bf16.msra.mxu0 0
    %102 = vmatprep.subr.bf16.mxu0 0
    %103 = vmatpush1.bf16.msra.mxu0 0
    %104 = vmatprep.subr.bf16.mxu0 0
    %105 = vmatpush1.bf16.msra.mxu0 0
    %106 = vmatprep.mubr.bf16.mxu0 0
    %107 = vmatmul.mubr.bf16.gmra.mrb[0].mxu0 %v72
    %v108 = vpop.f32.mrb[0].mxu0
    %v109 = vadd.f32 %v43, %v108
    %v110 = vpop.f32.mrb[0].mxu0
    %v111 = vadd.f32 %v47, %v110
    %v112 = vpop.f32.mrb[0].mxu0
    %v113 = vpop.f32.mrb[0].mxu0
    %114 = vdwg.mxu0
    %vm115 = vcmask 33792
    %116 = vst.msk [vmem:[#allocation5] sm:$0x3] %vm115, %v109
    %vm117 = vcmask 156672
    %118 = vst.msk [vmem:[#allocation6] sm:$0x3] %vm117, %v111
    // Predicated region
    $region18: #{fast_rcnn_predictor_packed.1} parent=1 // pred_check
      _
    $region19: #{fast_rcnn_predictor_packed.1} parent=1 // pred_check_branch
      %120 = sbr.rel (0) target = $region21
    $region20: #{fast_rcnn_predictor_packed.1} parent=1 // pred_region
      %s122 = ssub.s32 32, 32
      %123 = vsyncadd [#allocation4], %s122
      %s125 = sshll.u32 [#allocation5], 4
      %s126 = int_to_ptr.vmem [resolvable:$true] %s125
      %128 = dma.vmem_to_hbm [thread:$0]  %s126, 32, %s3, [#allocation4]
    $region21: #{fast_rcnn_predictor_packed.1} parent=1 // pred_fallthru
      _
    // Predicated region
    $region22: #{fast_rcnn_predictor_packed.1} parent=1 // pred_check
      _
    $region23: #{fast_rcnn_predictor_packed.1} parent=1 // pred_check_branch
      %130 = sbr.rel (0) target = $region25
    $region24: #{fast_rcnn_predictor_packed.1} parent=1 // pred_region
      %s132 = ssub.s32 32, 32
      %133 = vsyncadd [#allocation7], %s132
      %s135 = sshll.u32 [#allocation6], 4
      %s136 = int_to_ptr.vmem [resolvable:$true] %s135
      %138 = dma.vmem_to_hbm [thread:$0]  %s136, 32, %s4, [#allocation7]
    $region25: #{fast_rcnn_predictor_packed.1} parent=1 // pred_fallthru
      _
    // Predicated region
    $region26: #{fast_rcnn_predictor_packed.1} parent=1 // pred_check
      _
    $region27: #{fast_rcnn_predictor_packed.1} parent=1 // pred_check_branch
      %140 = sbr.rel (0) target = $region29
    $region28: #{fast_rcnn_predictor_packed.1} parent=1 // pred_region
      %141 = dma.done [#allocation4], 32
    $region29: #{fast_rcnn_predictor_packed.1} parent=1 // pred_fallthru
      _
    // Predicated region
    $region30: #{fast_rcnn_predictor_packed.1} parent=1 // pred_check
      _
    $region31: #{fast_rcnn_predictor_packed.1} parent=1 // pred_check_branch
      %143 = sbr.rel (0) target = $region33
    $region32: #{fast_rcnn_predictor_packed.1} parent=1 // pred_region
      %144 = dma.done [#allocation7], 32
    $region33: #{fast_rcnn_predictor_packed.1} parent=1 // pred_fallthru
      _
    %145 = vsyncpa [#allocation3], 1
    %146 = vsyncpa [#allocation4], 1
    %147 = vsyncpa [#allocation7], 1

</llo_original>
